<compile_context>
chip_gen: v7x
topology: tpu7x:2x2x1
jax: 0.10.0
libtpu: 0.0.40
codegen_flags: <defaults>
</compile_context>

<pallas_src>
import functools

import jax
import jax.numpy as jnp
from jax.experimental import pallas as pl
from jax.experimental.pallas import tpu as pltpu

MARGIN_POSITIVE = 2.5
MARGIN_NEGATIVE = 0.5
GAMMA = 2.0


def _softplus(x):
    # Numerically stable log1p(exp(x)).
    return jnp.maximum(x, 0.0) + jnp.log1p(jnp.exp(-jnp.abs(x)))


def _round_up(x, m):
    return ((x + m - 1) // m) * m


def _prl_kernel(n_valid, scores_ref, labels_ref, loss_ref):
    """Per-tile pairwise ranking loss, batch on lanes.

    scores_ref: [C, TN]  input-dtype VMEM tile (class on sublanes, batch on lanes)
    labels_ref: [1, TN]  int32 VMEM tile
    loss_ref:   [1, TN]  f32 per-row loss (padded rows written as 0)
    """
    i = pl.program_id(0)

    scores = scores_ref[...].astype(jnp.float32)      # [C, TN] f32
    labels = labels_ref[...]                          # [1, TN] i32
    c, tn = scores.shape

    class_ids = jax.lax.broadcasted_iota(jnp.int32, (c, tn), 0)
    is_label = class_ids == labels                    # one_hot(labels) == 1
    neg_inf = jnp.float32(-jnp.inf)

    # positive_scores: max over the label class (sublane reduce)
    pos = jnp.max(jnp.where(is_label, scores, neg_inf), axis=0, keepdims=True)  # [1,TN]
    # negative_scores: max over all non-label classes
    neg = jnp.max(jnp.where(is_label, neg_inf, scores), axis=0, keepdims=True)  # [1,TN]

    pos_loss = _softplus(GAMMA * (MARGIN_POSITIVE - pos))
    pos_loss = jnp.where(labels == 0, jnp.float32(0.0), pos_loss)
    neg_loss = _softplus(GAMMA * (MARGIN_NEGATIVE + neg))

    # Mask out batch-padding rows so they contribute 0 to the mean.
    col = jax.lax.broadcasted_iota(jnp.int32, (1, tn), 1) + i * tn
    valid = col < n_valid
    loss_ref[...] = jnp.where(valid, pos_loss + neg_loss, jnp.float32(0.0))


def pairwise_ranking_loss(scores, labels, *, max_tile_n=2048):
    """scores: [N, C] float (f32 or bf16), labels: [N] int -> scalar f32 loss."""
    N, C = scores.shape

    # Batch tile on lanes: multiple of 128, as large as the batch allows
    # (capped so 2 double-buffered input tiles stay far below even v7x's
    # 64 MiB VMEM for any realistic C).
    tile_n = min(max_tile_n, _round_up(N, 128))
    n_pad = _round_up(N, tile_n)

    # Lane-dense layout plumbing (class -> sublanes, batch -> lanes).
    scores_t = jnp.pad(jnp.transpose(scores), ((0, 0), (0, n_pad - N)))
    labels2d = jnp.pad(labels.astype(jnp.int32), (0, n_pad - N)).reshape(1, n_pad)

    losses = pl.pallas_call(
        functools.partial(_prl_kernel, N),
        out_shape=jax.ShapeDtypeStruct((1, n_pad), jnp.float32),
        grid_spec=pltpu.PrefetchScalarGridSpec(
            num_scalar_prefetch=0,
            grid=(n_pad // tile_n,),
            in_specs=[
                pl.BlockSpec((C, tile_n), lambda i: (0, i)),
                pl.BlockSpec((1, tile_n), lambda i: (0, i)),
            ],
            out_specs=pl.BlockSpec((1, tile_n), lambda i: (0, i)),
        ),
        compiler_params=pltpu.CompilerParams(
            dimension_semantics=("parallel",)),
    )(scores_t, labels2d)

    # Padded rows are already zero; denominator is the true batch size.
    return jnp.sum(losses) / jnp.float32(N)


def _reference(scores, labels):
    """Pure-JAX mirror of the PyTorch forward (stable-softplus equivalent)."""
    scores = scores.astype(jnp.float32)
    C = scores.shape[-1]
    mask = jax.nn.one_hot(labels, C, dtype=jnp.int32)
    pos = jnp.max(jnp.where(mask == 0, -jnp.inf, scores), axis=1)
    neg = jnp.max(jnp.where(mask == 1, -jnp.inf, scores), axis=1)
    pos_loss = _softplus(GAMMA * (MARGIN_POSITIVE - pos))
    pos_loss = jnp.where(labels == 0, 0.0, pos_loss)
    neg_loss = _softplus(GAMMA * (MARGIN_NEGATIVE + neg))
    return jnp.mean(pos_loss + neg_loss)


if __name__ == "__main__":
    key = jax.random.PRNGKey(0)
    k_scores, k_labels = jax.random.split(key)

    N, C = 16, 16  # small batch of 16 examples, 16 relation classes
    scores = jax.random.normal(k_scores, (N, C), dtype=jnp.float32) * 3.0
    labels = jax.random.randint(k_labels, (N,), 0, C, dtype=jnp.int32)
    labels = labels.at[0].set(0)  # make sure the labels==0 zeroing path is hit

    loss = pairwise_ranking_loss(scores, labels)
    loss = jax.block_until_ready(loss)

    ref = _reference(scores, labels)
    assert jnp.allclose(loss, ref, rtol=1e-5, atol=1e-5), (loss, ref)
    print("KERNEL_OK")
</pallas_src>

<mosaic_0001>
module attributes {stable_mosaic.version = 11 : i64} {
  func.func @_prl_kernel(%arg0: i32, %arg1: memref<16x128xf32, #tpu.memory_space<vmem>>, %arg2: memref<1x128xi32, #tpu.memory_space<vmem>>, %arg3: memref<1x128xf32, #tpu.memory_space<vmem>>) attributes {dimension_semantics = [#tpu.dimension_semantics<parallel>], iteration_bounds = array<i64: 1>, scalar_prefetch = 0 : i64, scratch_operands = 0 : i64, tpu.core_type = #tpu.core_type<tc>, window_params = [{transform_indices = @transform_0, window_bounds = array<i64: 16, 128>}, {transform_indices = @transform_1, window_bounds = array<i64: 1, 128>}, {transform_indices = @transform_2, window_bounds = array<i64: 1, 128>}]} {
    %c0 = arith.constant 0 : index
    %c0_0 = arith.constant 0 : index
    %0 = vector.load %arg1[%c0, %c0_0] : memref<16x128xf32, #tpu.memory_space<vmem>>, vector<16x128xf32>
    %c0_1 = arith.constant 0 : index
    %c0_2 = arith.constant 0 : index
    %1 = vector.load %arg2[%c0_1, %c0_2] : memref<1x128xi32, #tpu.memory_space<vmem>>, vector<1x128xi32>
    %2 = tpu.iota {dimensions = array<i32: 0>} : vector<16x128xi32>
    %3 = vector.broadcast %1 : vector<1x128xi32> to vector<16x128xi32>
    %4 = arith.cmpi eq, %2, %3 : vector<16x128xi32>
    %cst = arith.constant 0xFF800000 : f32
    %5 = vector.broadcast %cst : f32 to vector<16x128xf32>
    %6 = arith.select %4, %0, %5 : vector<16x128xi1>, vector<16x128xf32>
    %cst_3 = arith.constant dense<0xFF800000> : vector<128xf32>
    %7 = vector.multi_reduction <maximumf>, %6, %cst_3 [0] : vector<16x128xf32> to vector<128xf32>
    %8 = vector.shape_cast %7 : vector<128xf32> to vector<1x128xf32>
    %cst_4 = arith.constant 0xFF800000 : f32
    %9 = vector.broadcast %cst_4 : f32 to vector<16x128xf32>
    %10 = arith.select %4, %9, %0 : vector<16x128xi1>, vector<16x128xf32>
    %cst_5 = arith.constant dense<0xFF800000> : vector<128xf32>
    %11 = vector.multi_reduction <maximumf>, %10, %cst_5 [0] : vector<16x128xf32> to vector<128xf32>
    %12 = vector.shape_cast %11 : vector<128xf32> to vector<1x128xf32>
    %cst_6 = arith.constant 2.500000e+00 : f32
    %13 = vector.broadcast %cst_6 : f32 to vector<1x128xf32>
    %14 = arith.subf %13, %8 : vector<1x128xf32>
    %cst_7 = arith.constant 2.000000e+00 : f32
    %15 = vector.broadcast %cst_7 : f32 to vector<1x128xf32>
    %16 = arith.mulf %15, %14 : vector<1x128xf32>
    %cst_8 = arith.constant 0.000000e+00 : f32
    %17 = vector.broadcast %cst_8 : f32 to vector<1x128xf32>
    %18 = arith.maximumf %16, %17 : vector<1x128xf32>
    %19 = math.absf %16 : vector<1x128xf32>
    %cst_9 = arith.constant 0.000000e+00 : f32
    %20 = vector.broadcast %cst_9 : f32 to vector<1x128xf32>
    %21 = arith.subf %20, %19 : vector<1x128xf32>
    %22 = math.exp %21 : vector<1x128xf32>
    %23 = math.log1p %22 : vector<1x128xf32>
    %24 = arith.addf %18, %23 : vector<1x128xf32>
    %c0_i32 = arith.constant 0 : i32
    %25 = vector.broadcast %c0_i32 : i32 to vector<1x128xi32>
    %26 = arith.cmpi eq, %1, %25 : vector<1x128xi32>
    %cst_10 = arith.constant 0.000000e+00 : f32
    %27 = vector.broadcast %cst_10 : f32 to vector<1x128xf32>
    %28 = arith.select %26, %27, %24 : vector<1x128xi1>, vector<1x128xf32>
    %cst_11 = arith.constant 5.000000e-01 : f32
    %29 = vector.broadcast %cst_11 : f32 to vector<1x128xf32>
    %30 = arith.addf %29, %12 : vector<1x128xf32>
    %cst_12 = arith.constant 2.000000e+00 : f32
    %31 = vector.broadcast %cst_12 : f32 to vector<1x128xf32>
    %32 = arith.mulf %31, %30 : vector<1x128xf32>
    %cst_13 = arith.constant 0.000000e+00 : f32
    %33 = vector.broadcast %cst_13 : f32 to vector<1x128xf32>
    %34 = arith.maximumf %32, %33 : vector<1x128xf32>
    %35 = math.absf %32 : vector<1x128xf32>
    %cst_14 = arith.constant 0.000000e+00 : f32
    %36 = vector.broadcast %cst_14 : f32 to vector<1x128xf32>
    %37 = arith.subf %36, %35 : vector<1x128xf32>
    %38 = math.exp %37 : vector<1x128xf32>
    %39 = math.log1p %38 : vector<1x128xf32>
    %40 = arith.addf %34, %39 : vector<1x128xf32>
    %41 = tpu.iota {dimensions = array<i32: 1>} : vector<1x128xi32>
    %c128_i32 = arith.constant 128 : i32
    %42 = arith.muli %arg0, %c128_i32 : i32
    %43 = vector.broadcast %42 : i32 to vector<1x128xi32>
    %44 = arith.addi %41, %43 : vector<1x128xi32>
    %c16_i32 = arith.constant 16 : i32
    %45 = vector.broadcast %c16_i32 : i32 to vector<1x128xi32>
    %46 = arith.cmpi slt, %44, %45 : vector<1x128xi32>
    %47 = arith.addf %28, %40 : vector<1x128xf32>
    %cst_15 = arith.constant 0.000000e+00 : f32
    %48 = vector.broadcast %cst_15 : f32 to vector<1x128xf32>
    %49 = arith.select %46, %47, %48 : vector<1x128xi1>, vector<1x128xf32>
    %c0_16 = arith.constant 0 : index
    %c0_17 = arith.constant 0 : index
    %50 = vector.load %arg3[%c0_16, %c0_17] : memref<1x128xf32, #tpu.memory_space<vmem>>, vector<1x128xf32>
    tpu.vector_store %arg3[%c0_16, %c0_17], %49 {strides = array<i32>} : memref<1x128xf32, #tpu.memory_space<vmem>>, vector<1x128xf32>,
    return
  }
  func.func @transform_0(%arg0: i32) -> (i32, i32) {
    %c0_i32 = arith.constant 0 : i32
    %c0_i32_0 = arith.constant 0 : i32
    return %c0_i32, %arg0 : i32, i32
  }
  func.func @transform_1(%arg0: i32) -> (i32, i32) {
    %c0_i32 = arith.constant 0 : i32
    %c0_i32_0 = arith.constant 0 : i32
    return %c0_i32, %arg0 : i32, i32
  }
  func.func @transform_2(%arg0: i32) -> (i32, i32) {
    %c0_i32 = arith.constant 0 : i32
    %c0_i32_0 = arith.constant 0 : i32
    return %c0_i32, %arg0 : i32, i32
  }
}

</mosaic_0001>

<llo_original>
// kernel: tpu_custom_call.1
$region0: #{tpu_custom_call.1}
  #allocation0 [shape = 'u32[]', space=smem, size = 0x4, offset = 0x4, fixed_abs, tag = 'smem constant byte address 0x4 - core index']
  #allocation1 [shape = 'u32[144,128]{1,0:T(1,128)}', space=vmem, size = 0x12000, scoped, tag = 'internal scratch']
  %s0 = inlined_call_operand.hbm [shape: f32[16,128], index: 0, kind: input, shape index: {}]
  %s1 = inlined_call_operand.vmem [shape: s32[1,128], index: 1, kind: input, shape index: {}]
  %s2 = inlined_call_operand.hbm [shape: f32[1,128], index: 2, kind: output, shape index: {}]
  %s3 = sld [smem:[#allocation0]]
  $region22: #{tpu_custom_call.1} parent=0
    _
  %s5 = ssub.s32 1, %s3
  %s6 = scalar_select 0, %s5, %s3
  $region1: #{tpu_custom_call.1} parent=0
    #allocation2 [shape = 'u8[8192]{0}', space=vmem, size = 0x2000, scoped, tag = 'input window, operand 0, single buffered']
    #allocation3 [shape = 's32[1]{0}', space=sflag, size = 0x4, scoped, tag = 'scoped memory for tpu_custom_call.1']
    #allocation4 [shape = 's32[1]{0}', space=sflag, size = 0x4, scoped, tag = 'scoped memory for tpu_custom_call.1']
    #allocation5 [shape = 'u8[512]{0}', space=vmem, size = 0x400, scoped, tag = 'output window, operand 0, single buffered']
    %7 = vsyncpa [#allocation3], 0
    %8 = vsyncpa [#allocation4], 0
    // Predicated region
    $region2: #{tpu_custom_call.1} parent=1 // pred_check
      _
    $region3: #{tpu_custom_call.1} parent=1 // pred_check_branch
      %10 = sbr.rel (0) target = $region5
    $region4: #{tpu_custom_call.1} parent=1 // pred_region
      %s12 = ssub.s32 256, 256
      %13 = vsyncadd [#allocation3], %s12
      %s14 = sshll.u32 [#allocation2], 4
      %s15 = int_to_ptr.vmem [resolvable:$true] %s14
      %20 = dma.hbm_to_vmem [thread:$0]  %s0, 256, %s15, [#allocation3], 128, 128, 8
    $region5: #{tpu_custom_call.1} parent=1 // pred_fallthru
      _
    // Predicated region
    $region6: #{tpu_custom_call.1} parent=1 // pred_check
      _
    $region7: #{tpu_custom_call.1} parent=1 // pred_check_branch
      %22 = sbr.rel (0) target = $region9
    $region8: #{tpu_custom_call.1} parent=1 // pred_region
      _
    $region9: #{tpu_custom_call.1} parent=1 // pred_fallthru
      _
    // Predicated region
    $region10: #{tpu_custom_call.1} parent=1 // pred_check
      _
    $region11: #{tpu_custom_call.1} parent=1 // pred_check_branch
      %24 = sbr.rel (0) target = $region13
    $region12: #{tpu_custom_call.1} parent=1 // pred_region
      %25 = dma.done [#allocation3], 256
    $region13: #{tpu_custom_call.1} parent=1 // pred_fallthru
      _
    %v26 = vld [vmem:[#allocation2] sm:$0xff]
    %v27 = vld [vmem:[#allocation2 + $0x8] sm:$0xff]
    %v28 = vld [vmem:[%s1] sm:$0x1]
    %v29 = vlaneseq
    %v30 = vshrl.u32 %v29, 7
    %v31 = vadd.s32 %v30, 8
    %v32 = vlaneseq
    %v33 = vshrl.u32 %v32, 7
    %v34 = vsub.s32 0, %v33
    %v35 = vrot.slane %v28, %v34
    %vm36 = vcmp.eq.s32.totalorder %v30, %v35
    %vm37 = vcmp.eq.s32.totalorder %v31, %v35
    %v38 = vsel %vm36, %v26, -inf
    %v39 = vsel %vm37, %v27, -inf
    %v40 = vmax.f32 %v38, %v39
    %v41 = vrot.slane %v40, 4
    %v42 = vmax.f32 %v40, %v41
    %v43 = vrot.slane %v42, 2
    %v44 = vmax.f32 %v42, %v43
    %v45 = vrot.slane %v44, 1
    %v46 = vmax.f32 %v44, %v45
    %v47 = vsel %vm36, -inf, %v26
    %v48 = vsel %vm37, -inf, %v27
    %v49 = vmax.f32 %v47, %v48
    %v50 = vrot.slane %v49, 4
    %v51 = vmax.f32 %v49, %v50
    %v52 = vrot.slane %v51, 2
    %v53 = vmax.f32 %v51, %v52
    %v54 = vrot.slane %v53, 1
    %v55 = vmax.f32 %v53, %v54
    %v56 = vsub.f32 2.5, %v46
    %v57 = vmul.f32 %v56, 2.0
    %v58 = vmax.f32 %v57, 0.0
    %v59 = vand.u32 2147483647, %v57
    %v60 = vsub.f32 0.0, %v59
    %v61 = vmul.f32 %v60, 1.442695
    %v62 = vpow.pop %v61
    %v63 = vadd.f32 %v62, 1.0
    %v64 = vlog2.pop %v63
    %v65 = vmul.f32 %v64, 0.6931472
    %v66 = vmul.f32 -0.5, %v62
    %v67 = vadd.f32 %v66, 1.0
    %v68 = vmul.f32 %v67, %v62
    %v69 = vand.u32 2147483647, %v62
    %vm70 = vcmp.lt.f32.partialorder %v69, 0.0004427343
    %v71 = vsel %vm70, %v68, %v65
    %v72 = vadd.f32 %v58, %v71
    %vm73 = vcmp.eq.s32.totalorder %v28, 0
    %v74 = vsel %vm73, 0.0, %v72
    %v75 = vadd.f32 %v55, 0.5
    %v76 = vmul.f32 %v75, 2.0
    %v77 = vmax.f32 %v76, 0.0
    %v78 = vand.u32 2147483647, %v76
    %v79 = vsub.f32 0.0, %v78
    %v80 = vmul.f32 %v79, 1.442695
    %v81 = vpow.pop %v80
    %v82 = vadd.f32 %v81, 1.0
    %v83 = vlog2.pop %v82
    %v84 = vmul.f32 %v83, 0.6931472
    %v85 = vmul.f32 -0.5, %v81
    %v86 = vadd.f32 %v85, 1.0
    %v87 = vmul.f32 %v86, %v81
    %v88 = vand.u32 2147483647, %v81
    %vm89 = vcmp.lt.f32.partialorder %v88, 0.0004427343
    %v90 = vsel %vm89, %v87, %v84
    %v91 = vadd.f32 %v77, %v90
    %v92 = vlaneseq
    %v93 = vand.u32 %v92, 127
    %s94 = smul.u32 0, 128
    %v95 = vstv %s94
    %v96 = vadd.s32 %v93, %v95
    %vm97 = vcmp.lt.s32.totalorder %v96, 16
    %v98 = vadd.f32 %v74, %v91
    %v99 = vsel %vm97, %v98, 0.0
    %100 = vst [vmem:[#allocation5] sm:$0x1] %v99
    // Predicated region
    $region14: #{tpu_custom_call.1} parent=1 // pred_check
      _
    $region15: #{tpu_custom_call.1} parent=1 // pred_check_branch
      %102 = sbr.rel (0) target = $region17
    $region16: #{tpu_custom_call.1} parent=1 // pred_region
      %s104 = ssub.s32 16, 16
      %105 = vsyncadd [#allocation4], %s104
      %s107 = sshll.u32 [#allocation5], 4
      %s108 = int_to_ptr.vmem [resolvable:$true] %s107
      %110 = dma.vmem_to_hbm [thread:$0]  %s108, 16, %s2, [#allocation4]
    $region17: #{tpu_custom_call.1} parent=1 // pred_fallthru
      _
    // Predicated region
    $region18: #{tpu_custom_call.1} parent=1 // pred_check
      _
    $region19: #{tpu_custom_call.1} parent=1 // pred_check_branch
      %112 = sbr.rel (0) target = $region21
    $region20: #{tpu_custom_call.1} parent=1 // pred_region
      %113 = dma.done [#allocation4], 16
    $region21: #{tpu_custom_call.1} parent=1 // pred_fallthru
      _
    %114 = vsyncpa [#allocation3], 1
    %115 = vsyncpa [#allocation4], 1

</llo_original>
